<compile_context>
chip_gen: v7x
topology: tpu7x:2x2x1
jax: 0.10.0
libtpu: 0.0.40
codegen_flags: <defaults>
</compile_context>

<pallas_src>
import functools

import jax
import jax.numpy as jnp
from jax.experimental import pallas as pl
from jax.experimental.pallas import tpu as pltpu


def _round_up(n, m):
    return ((n + m - 1) // m) * m


def _has_bf16_vpu():
    """bf16 elementwise path only on chips with a bf16 VALU (v6e / v7x)."""
    try:
        kind = jax.devices()[0].device_kind.lower()
    except Exception:
        return True
    for tag in ("v2", "v3", "v4", "v5 lite", "v5e", "v5litepod"):
        if tag in kind:
            return False
    return True


def _softplus(h):
    # PyTorch softplus (beta=1, threshold=20): linear for x > 20.
    return jnp.where(h > 20.0, h, jnp.log1p(jnp.exp(jnp.minimum(h, 20.0))))


def mse_derv_kernel(alphas_ref,                   # SMEM (5,) f32: per-layer PReLU alphas
                    t_ref,                        # VMEM (TB, 4) bf16  (cat(x, y))
                    w1_ref, b1_ref,               # (4,32) bf16,   (1,32) act_dtype
                    w2_ref, b2_ref,               # (32,64) bf16,  (1,64) act_dtype
                    w3_ref, b3_ref,               # (64,128) bf16, (1,128) act_dtype
                    w4_ref, b4_ref,               # (128,256) bf16,(1,256) act_dtype
                    w5_ref, b5_ref,               # (256,512) bf16,(1,512) act_dtype
                    w6_ref, b6_ref,               # (1,512) act_dtype, (1,1) f32
                    out_ref,                      # VMEM (TB, 1) f32
                    *, act_dtype):
    def bias_prelu(h_f32, b_ref, k):
        # bias + PReLU in act_dtype (bf16 on v6e/v7x -> half the VALU work and no
        # standalone cast pass; f32 on v5e).
        h = h_f32.astype(act_dtype) + b_ref[...]
        alpha = alphas_ref[k].astype(act_dtype)
        return jnp.where(h > 0, h, alpha * h)

    # ---- layer 1 (4 -> 32): single bf16 matmul, f32 accumulation ----
    h = jnp.dot(t_ref[...], w1_ref[...], preferred_element_type=jnp.float32)
    h = bias_prelu(h, b1_ref, 0)

    # ---- layers 2..5: bf16 operands into the MXU, f32 accumulation ----
    h = jnp.dot(h.astype(jnp.bfloat16), w2_ref[...],
                preferred_element_type=jnp.float32)
    h = bias_prelu(h, b2_ref, 1)
    h = jnp.dot(h.astype(jnp.bfloat16), w3_ref[...],
                preferred_element_type=jnp.float32)
    h = bias_prelu(h, b3_ref, 2)
    h = jnp.dot(h.astype(jnp.bfloat16), w4_ref[...],
                preferred_element_type=jnp.float32)
    h = bias_prelu(h, b4_ref, 3)
    h = jnp.dot(h.astype(jnp.bfloat16), w5_ref[...],
                preferred_element_type=jnp.float32)
    h = bias_prelu(h, b5_ref, 4)

    # ---- layer 6 (512 -> 1): VPU multiply + lane reduce (f32 accumulation) ----
    prod = (h * w6_ref[...]).astype(jnp.float32)
    z = jnp.sum(prod, axis=-1, keepdims=True) + b6_ref[...]
    out_ref[...] = _softplus(z)


@functools.partial(jax.jit, static_argnames=("block_b", "bf16_act"))
def mse_derv_forward(x, y, params, alphas, *, block_b=2048, bf16_act=None):
    """x: [B, 2], y: [B, 2]. params: 6 (W[in,out], b[out]) pairs. alphas: (5,) PReLU
    parameters. Returns [B, 1] float32."""
    if bf16_act is None:
        bf16_act = _has_bf16_vpu()
    act_dtype = jnp.bfloat16 if bf16_act else jnp.float32

    B = x.shape[0]
    if B >= 256:
        # >=2 grid tiles (v7x megacore sharding of the "parallel" axis) and an
        # MXU-friendly multiple of 128, capped at block_b.
        TB = min(block_b, _round_up((B + 1) // 2, 128))
    else:
        TB = _round_up(max(B, 1), 8)
    B_pad = _round_up(B, TB)

    # Pre-concatenate (x, y) once in the wrapper; bf16 operands for the MXU.
    t = jnp.concatenate([x.astype(jnp.float32), y.astype(jnp.float32)], axis=1)
    t = t.astype(jnp.bfloat16)
    if B_pad != B:
        t = jnp.pad(t, ((0, B_pad - B), (0, 0)))

    (w1, b1), (w2, b2), (w3, b3), (w4, b4), (w5, b5), (w6, b6) = params

    flat = [
        t,
        w1.astype(jnp.bfloat16), b1.reshape(1, -1).astype(act_dtype),
        w2.astype(jnp.bfloat16), b2.reshape(1, -1).astype(act_dtype),
        w3.astype(jnp.bfloat16), b3.reshape(1, -1).astype(act_dtype),
        w4.astype(jnp.bfloat16), b4.reshape(1, -1).astype(act_dtype),
        w5.astype(jnp.bfloat16), b5.reshape(1, -1).astype(act_dtype),
        # layer 6: weight as a (1, 512) row for the VPU multiply + lane reduce
        w6.T.astype(act_dtype), b6.reshape(1, 1).astype(jnp.float32),
    ]

    # Batch-tiled input spec; weights/biases get a constant block index so they
    # are DMA'd once and stay VMEM-resident across grid steps.
    in_specs = [pl.BlockSpec((TB, 4), lambda i, alphas_smem: (i, 0))] + [
        pl.BlockSpec(a.shape, lambda i, alphas_smem: (0, 0)) for a in flat[1:]
    ]

    grid_spec = pltpu.PrefetchScalarGridSpec(
        num_scalar_prefetch=1,                    # alphas -> SMEM
        grid=(B_pad // TB,),
        in_specs=in_specs,
        out_specs=pl.BlockSpec((TB, 1), lambda i, alphas_smem: (i, 0)),
    )

    out = pl.pallas_call(
        functools.partial(mse_derv_kernel, act_dtype=act_dtype),
        out_shape=jax.ShapeDtypeStruct((B_pad, 1), jnp.float32),
        grid_spec=grid_spec,
        compiler_params=pltpu.CompilerParams(
            dimension_semantics=("parallel",)),   # v7x: shard batch tiles across TCs
    )(alphas.astype(jnp.float32), *flat)
    return out[:B]


def mse_derv_reference(x, y, params, alphas):
    """Pure-JAX f32 reference matching the PyTorch module."""
    h = jnp.concatenate([x, y], axis=1)
    for k in range(5):
        w, b = params[k]
        h = h @ w + b
        h = jnp.where(h > 0, h, alphas[k] * h)
    w, b = params[5]
    z = h @ w + b
    return jnp.where(z > 20.0, z, jnp.log1p(jnp.exp(jnp.minimum(z, 20.0))))


def init_params(key):
    """Deterministic init matching the PyTorch layer shapes.

    PyTorch Linear stores weight as [out, in]; we store it transposed [in, out]
    so the kernel can do activations @ W directly.
    """
    dims = [(4, 32), (32, 64), (64, 128), (128, 256), (256, 512), (512, 1)]
    params = []
    for (fan_in, fan_out) in dims:
        key, kw, kb = jax.random.split(key, 3)
        bound = 1.0 / jnp.sqrt(fan_in)
        w = jax.random.uniform(kw, (fan_in, fan_out), jnp.float32, -bound, bound)
        b = jax.random.uniform(kb, (fan_out,), jnp.float32, -bound, bound)
        params.append((w, b))
    return params


if __name__ == "__main__":
    key = jax.random.PRNGKey(0)
    key, kx, ky = jax.random.split(key, 3)

    params = init_params(key)
    alphas = jnp.full((5,), 0.25, jnp.float32)  # nn.PReLU() default init per layer

    # Small smoke test (single grid step).
    B = 8
    x = jax.random.normal(kx, (B, 2), jnp.float32)
    y = jax.random.normal(ky, (B, 2), jnp.float32)
    out = jax.block_until_ready(mse_derv_forward(x, y, params, alphas))
    ref = mse_derv_reference(x, y, params, alphas)
    assert out.shape == (B, 1), out.shape
    assert bool(jnp.all(jnp.isfinite(out)))
    assert bool(jnp.all(out > 0)), "softplus output must be positive"
    assert bool(jnp.allclose(out, ref, rtol=0.1, atol=0.1)), (
        float(jnp.max(jnp.abs(out - ref))))

    # Multiple batch tiles + padding with a small explicit tile (grid / pipelining).
    key, kx2, ky2 = jax.random.split(key, 3)
    B2 = 300
    x2 = jax.random.normal(kx2, (B2, 2), jnp.float32)
    y2 = jax.random.normal(ky2, (B2, 2), jnp.float32)
    out2 = jax.block_until_ready(
        mse_derv_forward(x2, y2, params, alphas, block_b=128))
    ref2 = mse_derv_reference(x2, y2, params, alphas)
    assert out2.shape == (B2, 1), out2.shape
    assert bool(jnp.allclose(out2, ref2, rtol=0.1, atol=0.1)), (
        float(jnp.max(jnp.abs(out2 - ref2))))

    # Default tile selection path (>=2 tiles, TB rounded to a multiple of 128).
    out3 = jax.block_until_ready(mse_derv_forward(x2, y2, params, alphas))
    assert out3.shape == (B2, 1), out3.shape
    assert bool(jnp.allclose(out3, ref2, rtol=0.1, atol=0.1)), (
        float(jnp.max(jnp.abs(out3 - ref2))))

    print("KERNEL_OK")
</pallas_src>

<mosaic_0001>
module attributes {stable_mosaic.version = 11 : i64} {
  func.func @mse_derv_kernel(%arg0: i32, %arg1: memref<5xf32, #tpu.memory_space<smem>>, %arg2: memref<8x4xbf16, #tpu.memory_space<vmem>>, %arg3: memref<4x32xbf16, #tpu.memory_space<vmem>>, %arg4: memref<1x32xbf16, #tpu.memory_space<vmem>>, %arg5: memref<32x64xbf16, #tpu.memory_space<vmem>>, %arg6: memref<1x64xbf16, #tpu.memory_space<vmem>>, %arg7: memref<64x128xbf16, #tpu.memory_space<vmem>>, %arg8: memref<1x128xbf16, #tpu.memory_space<vmem>>, %arg9: memref<128x256xbf16, #tpu.memory_space<vmem>>, %arg10: memref<1x256xbf16, #tpu.memory_space<vmem>>, %arg11: memref<256x512xbf16, #tpu.memory_space<vmem>>, %arg12: memref<1x512xbf16, #tpu.memory_space<vmem>>, %arg13: memref<1x512xbf16, #tpu.memory_space<vmem>>, %arg14: memref<1x1xf32, #tpu.memory_space<vmem>>, %arg15: memref<8x1xf32, #tpu.memory_space<vmem>>) attributes {dimension_semantics = [#tpu.dimension_semantics<parallel>], iteration_bounds = array<i64: 1>, scalar_prefetch = 1 : i64, scratch_operands = 0 : i64, tpu.core_type = #tpu.core_type<tc>, window_params = [{transform_indices = @transform_0, window_bounds = array<i64: 8, 4>}, {pipeline_mode = #tpu.pipeline_mode<synchronous>, transform_indices = @transform_1, window_bounds = array<i64: 4, 32>}, {pipeline_mode = #tpu.pipeline_mode<synchronous>, transform_indices = @transform_2, window_bounds = array<i64: 1, 32>}, {pipeline_mode = #tpu.pipeline_mode<synchronous>, transform_indices = @transform_3, window_bounds = array<i64: 32, 64>}, {pipeline_mode = #tpu.pipeline_mode<synchronous>, transform_indices = @transform_4, window_bounds = array<i64: 1, 64>}, {pipeline_mode = #tpu.pipeline_mode<synchronous>, transform_indices = @transform_5, window_bounds = array<i64: 64, 128>}, {pipeline_mode = #tpu.pipeline_mode<synchronous>, transform_indices = @transform_6, window_bounds = array<i64: 1, 128>}, {pipeline_mode = #tpu.pipeline_mode<synchronous>, transform_indices = @transform_7, window_bounds = array<i64: 128, 256>}, {pipeline_mode = #tpu.pipeline_mode<synchronous>, transform_indices = @transform_8, window_bounds = array<i64: 1, 256>}, {pipeline_mode = #tpu.pipeline_mode<synchronous>, transform_indices = @transform_9, window_bounds = array<i64: 256, 512>}, {pipeline_mode = #tpu.pipeline_mode<synchronous>, transform_indices = @transform_10, window_bounds = array<i64: 1, 512>}, {pipeline_mode = #tpu.pipeline_mode<synchronous>, transform_indices = @transform_11, window_bounds = array<i64: 1, 512>}, {pipeline_mode = #tpu.pipeline_mode<synchronous>, transform_indices = @transform_12, window_bounds = array<i64: 1, 1>}, {transform_indices = @transform_13, window_bounds = array<i64: 8, 1>}]} {
    %c0 = arith.constant 0 : index
    %c0_0 = arith.constant 0 : index
    %0 = vector.load %arg2[%c0, %c0_0] : memref<8x4xbf16, #tpu.memory_space<vmem>>, vector<8x4xbf16>
    %c0_1 = arith.constant 0 : index
    %c0_2 = arith.constant 0 : index
    %1 = vector.load %arg3[%c0_1, %c0_2] : memref<4x32xbf16, #tpu.memory_space<vmem>>, vector<4x32xbf16>
    %cst = arith.constant dense<0.000000e+00> : vector<8x32xf32>
    %2 = tpu.matmul %0, %1, %cst {dimension_numbers = #tpu.dot_dimension_numbers<[1], [0], [0], [1], [0, 0, 1, 1], [], []>} : vector<8x4xbf16>, vector<4x32xbf16>, vector<8x32xf32> -> vector<8x32xf32>
    %3 = arith.truncf %2 : vector<8x32xf32> to vector<8x32xbf16>
    %c0_3 = arith.constant 0 : index
    %c0_4 = arith.constant 0 : index
    %4 = vector.load %arg4[%c0_3, %c0_4] : memref<1x32xbf16, #tpu.memory_space<vmem>>, vector<1x32xbf16>
    %5 = vector.broadcast %4 : vector<1x32xbf16> to vector<8x32xbf16>
    %6 = arith.addf %3, %5 : vector<8x32xbf16>
    %c0_5 = arith.constant 0 : index
    %7 = memref.load %arg1[%c0_5] : memref<5xf32, #tpu.memory_space<smem>>
    %8 = arith.truncf %7 : f32 to bf16
    %cst_6 = arith.constant 0.000000e+00 : bf16
    %9 = vector.broadcast %cst_6 : bf16 to vector<8x32xbf16>
    %10 = arith.cmpf ogt, %6, %9 : vector<8x32xbf16>
    %11 = vector.broadcast %8 : bf16 to vector<8x32xbf16>
    %12 = arith.mulf %11, %6 : vector<8x32xbf16>
    %13 = arith.select %10, %6, %12 : vector<8x32xi1>, vector<8x32xbf16>
    %c0_7 = arith.constant 0 : index
    %c0_8 = arith.constant 0 : index
    %14 = vector.load %arg5[%c0_7, %c0_8] : memref<32x64xbf16, #tpu.memory_space<vmem>>, vector<32x64xbf16>
    %cst_9 = arith.constant dense<0.000000e+00> : vector<8x64xf32>
    %15 = tpu.matmul %13, %14, %cst_9 {dimension_numbers = #tpu.dot_dimension_numbers<[1], [0], [0], [1], [0, 0, 1, 1], [], []>} : vector<8x32xbf16>, vector<32x64xbf16>, vector<8x64xf32> -> vector<8x64xf32>
    %16 = arith.truncf %15 : vector<8x64xf32> to vector<8x64xbf16>
    %c0_10 = arith.constant 0 : index
    %c0_11 = arith.constant 0 : index
    %17 = vector.load %arg6[%c0_10, %c0_11] : memref<1x64xbf16, #tpu.memory_space<vmem>>, vector<1x64xbf16>
    %18 = vector.broadcast %17 : vector<1x64xbf16> to vector<8x64xbf16>
    %19 = arith.addf %16, %18 : vector<8x64xbf16>
    %c1 = arith.constant 1 : index
    %20 = memref.load %arg1[%c1] : memref<5xf32, #tpu.memory_space<smem>>
    %21 = arith.truncf %20 : f32 to bf16
    %cst_12 = arith.constant 0.000000e+00 : bf16
    %22 = vector.broadcast %cst_12 : bf16 to vector<8x64xbf16>
    %23 = arith.cmpf ogt, %19, %22 : vector<8x64xbf16>
    %24 = vector.broadcast %21 : bf16 to vector<8x64xbf16>
    %25 = arith.mulf %24, %19 : vector<8x64xbf16>
    %26 = arith.select %23, %19, %25 : vector<8x64xi1>, vector<8x64xbf16>
    %c0_13 = arith.constant 0 : index
    %c0_14 = arith.constant 0 : index
    %27 = vector.load %arg7[%c0_13, %c0_14] : memref<64x128xbf16, #tpu.memory_space<vmem>>, vector<64x128xbf16>
    %cst_15 = arith.constant dense<0.000000e+00> : vector<8x128xf32>
    %28 = tpu.matmul %26, %27, %cst_15 {dimension_numbers = #tpu.dot_dimension_numbers<[1], [0], [0], [1], [0, 0, 1, 1], [], []>} : vector<8x64xbf16>, vector<64x128xbf16>, vector<8x128xf32> -> vector<8x128xf32>
    %29 = arith.truncf %28 : vector<8x128xf32> to vector<8x128xbf16>
    %c0_16 = arith.constant 0 : index
    %c0_17 = arith.constant 0 : index
    %30 = vector.load %arg8[%c0_16, %c0_17] : memref<1x128xbf16, #tpu.memory_space<vmem>>, vector<1x128xbf16>
    %31 = vector.broadcast %30 : vector<1x128xbf16> to vector<8x128xbf16>
    %32 = arith.addf %29, %31 : vector<8x128xbf16>
    %c2 = arith.constant 2 : index
    %33 = memref.load %arg1[%c2] : memref<5xf32, #tpu.memory_space<smem>>
    %34 = arith.truncf %33 : f32 to bf16
    %cst_18 = arith.constant 0.000000e+00 : bf16
    %35 = vector.broadcast %cst_18 : bf16 to vector<8x128xbf16>
    %36 = arith.cmpf ogt, %32, %35 : vector<8x128xbf16>
    %37 = vector.broadcast %34 : bf16 to vector<8x128xbf16>
    %38 = arith.mulf %37, %32 : vector<8x128xbf16>
    %39 = arith.select %36, %32, %38 : vector<8x128xi1>, vector<8x128xbf16>
    %c0_19 = arith.constant 0 : index
    %c0_20 = arith.constant 0 : index
    %40 = vector.load %arg9[%c0_19, %c0_20] : memref<128x256xbf16, #tpu.memory_space<vmem>>, vector<128x256xbf16>
    %cst_21 = arith.constant dense<0.000000e+00> : vector<8x256xf32>
    %41 = tpu.matmul %39, %40, %cst_21 {dimension_numbers = #tpu.dot_dimension_numbers<[1], [0], [0], [1], [0, 0, 1, 1], [], []>} : vector<8x128xbf16>, vector<128x256xbf16>, vector<8x256xf32> -> vector<8x256xf32>
    %42 = arith.truncf %41 : vector<8x256xf32> to vector<8x256xbf16>
    %c0_22 = arith.constant 0 : index
    %c0_23 = arith.constant 0 : index
    %43 = vector.load %arg10[%c0_22, %c0_23] : memref<1x256xbf16, #tpu.memory_space<vmem>>, vector<1x256xbf16>
    %44 = vector.broadcast %43 : vector<1x256xbf16> to vector<8x256xbf16>
    %45 = arith.addf %42, %44 : vector<8x256xbf16>
    %c3 = arith.constant 3 : index
    %46 = memref.load %arg1[%c3] : memref<5xf32, #tpu.memory_space<smem>>
    %47 = arith.truncf %46 : f32 to bf16
    %cst_24 = arith.constant 0.000000e+00 : bf16
    %48 = vector.broadcast %cst_24 : bf16 to vector<8x256xbf16>
    %49 = arith.cmpf ogt, %45, %48 : vector<8x256xbf16>
    %50 = vector.broadcast %47 : bf16 to vector<8x256xbf16>
    %51 = arith.mulf %50, %45 : vector<8x256xbf16>
    %52 = arith.select %49, %45, %51 : vector<8x256xi1>, vector<8x256xbf16>
    %c0_25 = arith.constant 0 : index
    %c0_26 = arith.constant 0 : index
    %53 = vector.load %arg11[%c0_25, %c0_26] : memref<256x512xbf16, #tpu.memory_space<vmem>>, vector<256x512xbf16>
    %cst_27 = arith.constant dense<0.000000e+00> : vector<8x512xf32>
    %54 = tpu.matmul %52, %53, %cst_27 {dimension_numbers = #tpu.dot_dimension_numbers<[1], [0], [0], [1], [0, 0, 1, 1], [], []>} : vector<8x256xbf16>, vector<256x512xbf16>, vector<8x512xf32> -> vector<8x512xf32>
    %55 = arith.truncf %54 : vector<8x512xf32> to vector<8x512xbf16>
    %c0_28 = arith.constant 0 : index
    %c0_29 = arith.constant 0 : index
    %56 = vector.load %arg12[%c0_28, %c0_29] : memref<1x512xbf16, #tpu.memory_space<vmem>>, vector<1x512xbf16>
    %57 = vector.broadcast %56 : vector<1x512xbf16> to vector<8x512xbf16>
    %58 = arith.addf %55, %57 : vector<8x512xbf16>
    %c4 = arith.constant 4 : index
    %59 = memref.load %arg1[%c4] : memref<5xf32, #tpu.memory_space<smem>>
    %60 = arith.truncf %59 : f32 to bf16
    %cst_30 = arith.constant 0.000000e+00 : bf16
    %61 = vector.broadcast %cst_30 : bf16 to vector<8x512xbf16>
    %62 = arith.cmpf ogt, %58, %61 : vector<8x512xbf16>
    %63 = vector.broadcast %60 : bf16 to vector<8x512xbf16>
    %64 = arith.mulf %63, %58 : vector<8x512xbf16>
    %65 = arith.select %62, %58, %64 : vector<8x512xi1>, vector<8x512xbf16>
    %c0_31 = arith.constant 0 : index
    %c0_32 = arith.constant 0 : index
    %66 = vector.load %arg13[%c0_31, %c0_32] : memref<1x512xbf16, #tpu.memory_space<vmem>>, vector<1x512xbf16>
    %67 = vector.broadcast %66 : vector<1x512xbf16> to vector<8x512xbf16>
    %68 = arith.mulf %65, %67 : vector<8x512xbf16>
    %69 = arith.extf %68 : vector<8x512xbf16> to vector<8x512xf32>
    %cst_33 = arith.constant dense<0.000000e+00> : vector<8xf32>
    %70 = vector.multi_reduction <add>, %69, %cst_33 [1] : vector<8x512xf32> to vector<8xf32>
    %71 = vector.shape_cast %70 : vector<8xf32> to vector<8x1xf32>
    %c0_34 = arith.constant 0 : index
    %c0_35 = arith.constant 0 : index
    %72 = vector.load %arg14[%c0_34, %c0_35] : memref<1x1xf32, #tpu.memory_space<vmem>>, vector<1x1xf32>
    %73 = vector.broadcast %72 : vector<1x1xf32> to vector<8x1xf32>
    %74 = arith.addf %71, %73 : vector<8x1xf32>
    %cst_36 = arith.constant 2.000000e+01 : f32
    %75 = vector.broadcast %cst_36 : f32 to vector<8x1xf32>
    %76 = arith.cmpf ogt, %74, %75 : vector<8x1xf32>
    %cst_37 = arith.constant 2.000000e+01 : f32
    %77 = vector.broadcast %cst_37 : f32 to vector<8x1xf32>
    %78 = arith.minimumf %74, %77 : vector<8x1xf32>
    %79 = math.exp %78 : vector<8x1xf32>
    %80 = math.log1p %79 : vector<8x1xf32>
    %81 = arith.select %76, %74, %80 : vector<8x1xi1>, vector<8x1xf32>
    %c0_38 = arith.constant 0 : index
    %c0_39 = arith.constant 0 : index
    %82 = vector.load %arg15[%c0_38, %c0_39] : memref<8x1xf32, #tpu.memory_space<vmem>>, vector<8x1xf32>
    tpu.vector_store %arg15[%c0_38, %c0_39], %81 {strides = array<i32>} : memref<8x1xf32, #tpu.memory_space<vmem>>, vector<8x1xf32>,
    return
  }
  func.func @transform_0(%arg0: i32, %arg1: memref<5xf32, #tpu.memory_space<smem>>) -> (i32, i32) {
    %c0_i32 = arith.constant 0 : i32
    %c0_i32_0 = arith.constant 0 : i32
    return %arg0, %c0_i32 : i32, i32
  }
  func.func @transform_1(%arg0: i32, %arg1: memref<5xf32, #tpu.memory_space<smem>>) -> (i32, i32) {
    %c0_i32 = arith.constant 0 : i32
    %c0_i32_0 = arith.constant 0 : i32
    %c0_i32_1 = arith.constant 0 : i32
    return %c0_i32, %c0_i32_0 : i32, i32
  }
  func.func @transform_2(%arg0: i32, %arg1: memref<5xf32, #tpu.memory_space<smem>>) -> (i32, i32) {
    %c0_i32 = arith.constant 0 : i32
    %c0_i32_0 = arith.constant 0 : i32
    %c0_i32_1 = arith.constant 0 : i32
    return %c0_i32, %c0_i32_0 : i32, i32
  }
  func.func @transform_3(%arg0: i32, %arg1: memref<5xf32, #tpu.memory_space<smem>>) -> (i32, i32) {
    %c0_i32 = arith.constant 0 : i32
    %c0_i32_0 = arith.constant 0 : i32
    %c0_i32_1 = arith.constant 0 : i32
    return %c0_i32, %c0_i32_0 : i32, i32
  }
  func.func @transform_4(%arg0: i32, %arg1: memref<5xf32, #tpu.memory_space<smem>>) -> (i32, i32) {
    %c0_i32 = arith.constant 0 : i32
    %c0_i32_0 = arith.constant 0 : i32
    %c0_i32_1 = arith.constant 0 : i32
    return %c0_i32, %c0_i32_0 : i32, i32
  }
  func.func @transform_5(%arg0: i32, %arg1: memref<5xf32, #tpu.memory_space<smem>>) -> (i32, i32) {
    %c0_i32 = arith.constant 0 : i32
    %c0_i32_0 = arith.constant 0 : i32
    %c0_i32_1 = arith.constant 0 : i32
    return %c0_i32, %c0_i32_0 : i32, i32
  }
  func.func @transform_6(%arg0: i32, %arg1: memref<5xf32, #tpu.memory_space<smem>>) -> (i32, i32) {
    %c0_i32 = arith.constant 0 : i32
    %c0_i32_0 = arith.constant 0 : i32
    %c0_i32_1 = arith.constant 0 : i32
    return %c0_i32, %c0_i32_0 : i32, i32
  }
  func.func @transform_7(%arg0: i32, %arg1: memref<5xf32, #tpu.memory_space<smem>>) -> (i32, i32) {
    %c0_i32 = arith.constant 0 : i32
    %c0_i32_0 = arith.constant 0 : i32
    %c0_i32_1 = arith.constant 0 : i32
    return %c0_i32, %c0_i32_0 : i32, i32
  }
  func.func @transform_8(%arg0: i32, %arg1: memref<5xf32, #tpu.memory_space<smem>>) -> (i32, i32) {
    %c0_i32 = arith.constant 0 : i32
    %c0_i32_0 = arith.constant 0 : i32
    %c0_i32_1 = arith.constant 0 : i32
    return %c0_i32, %c0_i32_0 : i32, i32
  }
  func.func @transform_9(%arg0: i32, %arg1: memref<5xf32, #tpu.memory_space<smem>>) -> (i32, i32) {
    %c0_i32 = arith.constant 0 : i32
    %c0_i32_0 = arith.constant 0 : i32
    %c0_i32_1 = arith.constant 0 : i32
    return %c0_i32, %c0_i32_0 : i32, i32
  }
  func.func @transform_10(%arg0: i32, %arg1: memref<5xf32, #tpu.memory_space<smem>>) -> (i32, i32) {
    %c0_i32 = arith.constant 0 : i32
    %c0_i32_0 = arith.constant 0 : i32
    %c0_i32_1 = arith.constant 0 : i32
    return %c0_i32, %c0_i32_0 : i32, i32
  }
  func.func @transform_11(%arg0: i32, %arg1: memref<5xf32, #tpu.memory_space<smem>>) -> (i32, i32) {
    %c0_i32 = arith.constant 0 : i32
    %c0_i32_0 = arith.constant 0 : i32
    %c0_i32_1 = arith.constant 0 : i32
    return %c0_i32, %c0_i32_0 : i32, i32
  }
  func.func @transform_12(%arg0: i32, %arg1: memref<5xf32, #tpu.memory_space<smem>>) -> (i32, i32) {
    %c0_i32 = arith.constant 0 : i32
    %c0_i32_0 = arith.constant 0 : i32
    %c0_i32_1 = arith.constant 0 : i32
    return %c0_i32, %c0_i32_0 : i32, i32
  }
  func.func @transform_13(%arg0: i32, %arg1: memref<5xf32, #tpu.memory_space<smem>>) -> (i32, i32) {
    %c0_i32 = arith.constant 0 : i32
    %c0_i32_0 = arith.constant 0 : i32
    return %arg0, %c0_i32 : i32, i32
  }
}

</mosaic_0001>

<llo_original>
// kernel: mse_derv_forward.1
$region0: #{mse_derv_forward.1}
  #allocation0 [shape = 'u32[]', space=smem, size = 0x4, offset = 0x4, fixed_abs, tag = 'smem constant byte address 0x4 - core index']
  #allocation1 [shape = 'u32[144,128]{1,0:T(1,128)}', space=vmem, size = 0x12000, scoped, tag = 'internal scratch']
  #allocation2 [shape = 's32[1]{0}', space=sflag, size = 0x4, scoped, tag = 'scoped memory for mse_derv_forward.1']
  #allocation3 [shape = 'u8[512]{0}', space=smem, size = 0x200, scoped, tag = 'prefetched SMEM operand 0']
  #allocation4 [shape = 'f32[1,1]{1,0:T(1,128)S(1)}', space=vmem, size = 0x200, scoped, tag = 'scoped memory for mse_derv_forward.1']
  %s0 = inlined_call_operand.vmem [shape: f32[5], index: 0, kind: input, shape index: {}]
  %s1 = inlined_call_operand.vmem [shape: bf16[8,4], index: 1, kind: input, shape index: {}]
  %s2 = inlined_call_operand.vmem [shape: bf16[4,32], index: 2, kind: input, shape index: {}]
  %s3 = inlined_call_operand.vmem [shape: bf16[1,32], index: 3, kind: input, shape index: {}]
  %s4 = inlined_call_operand.vmem [shape: bf16[32,64], index: 4, kind: input, shape index: {}]
  %s5 = inlined_call_operand.vmem [shape: bf16[1,64], index: 5, kind: input, shape index: {}]
  %s6 = inlined_call_operand.vmem [shape: bf16[64,128], index: 6, kind: input, shape index: {}]
  %s7 = inlined_call_operand.vmem [shape: bf16[1,128], index: 7, kind: input, shape index: {}]
  %s8 = inlined_call_operand.vmem [shape: bf16[128,256], index: 8, kind: input, shape index: {}]
  %s9 = inlined_call_operand.vmem [shape: bf16[1,256], index: 9, kind: input, shape index: {}]
  %s10 = inlined_call_operand.vmem [shape: bf16[256,512], index: 10, kind: input, shape index: {}]
  %s11 = inlined_call_operand.vmem [shape: bf16[1,512], index: 11, kind: input, shape index: {}]
  %s12 = inlined_call_operand.vmem [shape: bf16[1,512], index: 12, kind: input, shape index: {}]
  %s13 = inlined_call_operand.<no memory space> [shape: f32[1,1], index: 13, kind: input, shape index: {}]
  %s14 = inlined_call_operand.vmem [shape: f32[8,1], index: 14, kind: output, shape index: {}]
  %s15 = sld [smem:[#allocation0]]
  $region62: #{mse_derv_forward.1} parent=0
    _
  %s17 = ssub.s32 1, %s15
  %s18 = scalar_select 0, %s17, %s15
  %s19 = sshll.u32 %s0, 4
  %s20 = int_to_ptr.vmem [resolvable:$true] %s19
  %22 = dma.vmem_to_smem %s20, 16, [#allocation3], [#allocation2]
  %v23 = vstv %s13
  %24 = vst [vmem:[#allocation4] sm:$0x1] %v23
  %25 = dma.done [#allocation2], 16
  %26 = sfence
  // Predicated region
  $region2: #{mse_derv_forward.1} parent=0 // pred_check
    _
  $region3: #{mse_derv_forward.1} parent=0 // pred_check_branch
    %28 = sbr.rel (0) target = $region5
  $region4: #{mse_derv_forward.1} parent=0 // pred_region
    _
  $region5: #{mse_derv_forward.1} parent=0 // pred_fallthru
    _
  // Predicated region
  $region6: #{mse_derv_forward.1} parent=0 // pred_check
    _
  $region7: #{mse_derv_forward.1} parent=0 // pred_check_branch
    %30 = sbr.rel (0) target = $region9
  $region8: #{mse_derv_forward.1} parent=0 // pred_region
    _
  $region9: #{mse_derv_forward.1} parent=0 // pred_fallthru
    _
  // Predicated region
  $region10: #{mse_derv_forward.1} parent=0 // pred_check
    _
  $region11: #{mse_derv_forward.1} parent=0 // pred_check_branch
    %32 = sbr.rel (0) target = $region13
  $region12: #{mse_derv_forward.1} parent=0 // pred_region
    _
  $region13: #{mse_derv_forward.1} parent=0 // pred_fallthru
    _
  // Predicated region
  $region14: #{mse_derv_forward.1} parent=0 // pred_check
    _
  $region15: #{mse_derv_forward.1} parent=0 // pred_check_branch
    %34 = sbr.rel (0) target = $region17
  $region16: #{mse_derv_forward.1} parent=0 // pred_region
    _
  $region17: #{mse_derv_forward.1} parent=0 // pred_fallthru
    _
  // Predicated region
  $region18: #{mse_derv_forward.1} parent=0 // pred_check
    _
  $region19: #{mse_derv_forward.1} parent=0 // pred_check_branch
    %36 = sbr.rel (0) target = $region21
  $region20: #{mse_derv_forward.1} parent=0 // pred_region
    _
  $region21: #{mse_derv_forward.1} parent=0 // pred_fallthru
    _
  // Predicated region
  $region22: #{mse_derv_forward.1} parent=0 // pred_check
    _
  $region23: #{mse_derv_forward.1} parent=0 // pred_check_branch
    %38 = sbr.rel (0) target = $region25
  $region24: #{mse_derv_forward.1} parent=0 // pred_region
    _
  $region25: #{mse_derv_forward.1} parent=0 // pred_fallthru
    _
  // Predicated region
  $region26: #{mse_derv_forward.1} parent=0 // pred_check
    _
  $region27: #{mse_derv_forward.1} parent=0 // pred_check_branch
    %40 = sbr.rel (0) target = $region29
  $region28: #{mse_derv_forward.1} parent=0 // pred_region
    _
  $region29: #{mse_derv_forward.1} parent=0 // pred_fallthru
    _
  // Predicated region
  $region30: #{mse_derv_forward.1} parent=0 // pred_check
    _
  $region31: #{mse_derv_forward.1} parent=0 // pred_check_branch
    %42 = sbr.rel (0) target = $region33
  $region32: #{mse_derv_forward.1} parent=0 // pred_region
    _
  $region33: #{mse_derv_forward.1} parent=0 // pred_fallthru
    _
  // Predicated region
  $region34: #{mse_derv_forward.1} parent=0 // pred_check
    _
  $region35: #{mse_derv_forward.1} parent=0 // pred_check_branch
    %44 = sbr.rel (0) target = $region37
  $region36: #{mse_derv_forward.1} parent=0 // pred_region
    _
  $region37: #{mse_derv_forward.1} parent=0 // pred_fallthru
    _
  // Predicated region
  $region38: #{mse_derv_forward.1} parent=0 // pred_check
    _
  $region39: #{mse_derv_forward.1} parent=0 // pred_check_branch
    %46 = sbr.rel (0) target = $region41
  $region40: #{mse_derv_forward.1} parent=0 // pred_region
    _
  $region41: #{mse_derv_forward.1} parent=0 // pred_fallthru
    _
  // Predicated region
  $region42: #{mse_derv_forward.1} parent=0 // pred_check
    _
  $region43: #{mse_derv_forward.1} parent=0 // pred_check_branch
    %48 = sbr.rel (0) target = $region45
  $region44: #{mse_derv_forward.1} parent=0 // pred_region
    _
  $region45: #{mse_derv_forward.1} parent=0 // pred_fallthru
    _
  // Predicated region
  $region46: #{mse_derv_forward.1} parent=0 // pred_check
    _
  $region47: #{mse_derv_forward.1} parent=0 // pred_check_branch
    %50 = sbr.rel (0) target = $region49
  $region48: #{mse_derv_forward.1} parent=0 // pred_region
    _
  $region49: #{mse_derv_forward.1} parent=0 // pred_fallthru
    _
  // Predicated region
  $region50: #{mse_derv_forward.1} parent=0 // pred_check
    _
  $region51: #{mse_derv_forward.1} parent=0 // pred_check_branch
    %52 = sbr.rel (0) target = $region53
  $region52: #{mse_derv_forward.1} parent=0 // pred_region
    _
  $region53: #{mse_derv_forward.1} parent=0 // pred_fallthru
    _
  %v54 = vld [vmem:[%s1] sm:$0xf]
  %v55 = vld [vmem:[%s2] sm:$0x3]
  %vm56 = vcmask 31744
  %v58 = vsel %vm56, %v54, 0
  %vm60 = vcmask 1041408
  %v62 = vsel %vm60, %v55, 0
  %64 = vmatprep.subr.bf16.mxu0 0
  %65 = vmatpush1.bf16.msra.mxu0 %v62
  %66 = vmatprep.subr.bf16.mxu0 0
  %67 = vmatpush1.bf16.msra.mxu0 0
  %68 = vmatprep.subr.bf16.mxu0 0
  %69 = vmatpush1.bf16.msra.mxu0 0
  %70 = vmatprep.subr.bf16.mxu0 0
  %71 = vmatpush1.bf16.msra.mxu0 0
  %72 = vmatprep.subr.bf16.mxu0 0
  %73 = vmatpush1.bf16.msra.mxu0 0
  %74 = vmatprep.subr.bf16.mxu0 0
  %75 = vmatpush1.bf16.msra.mxu0 0
  %76 = vmatprep.subr.bf16.mxu0 0
  %77 = vmatpush1.bf16.msra.mxu0 0
  %78 = vmatprep.subr.bf16.mxu0 0
  %79 = vmatpush1.bf16.msra.mxu0 0
  %80 = vmatprep.subr.bf16.mxu0 0
  %81 = vmatpush1.bf16.msra.mxu0 0
  %82 = vmatprep.subr.bf16.mxu0 0
  %83 = vmatpush1.bf16.msra.mxu0 0
  %84 = vmatprep.subr.bf16.mxu0 0
  %85 = vmatpush1.bf16.msra.mxu0 0
  %86 = vmatprep.subr.bf16.mxu0 0
  %87 = vmatpush1.bf16.msra.mxu0 0
  %88 = vmatprep.subr.bf16.mxu0 0
  %89 = vmatpush1.bf16.msra.mxu0 0
  %90 = vmatprep.subr.bf16.mxu0 0
  %91 = vmatpush1.bf16.msra.mxu0 0
  %92 = vmatprep.subr.bf16.mxu0 0
  %93 = vmatpush1.bf16.msra.mxu0 0
  %94 = vmatprep.subr.bf16.mxu0 0
  %95 = vmatpush1.bf16.msra.mxu0 0
  %96 = vmatprep.mubr.bf16.mxu0 0
  %97 = vmatmul.mubr.bf16.gmra.mrb[0].mxu0 %v58
  %v98 = vpop.f32.mrb[0].mxu0
  %v99 = vadd.f32 0.0, %v98
  %v100 = vpop.f32.mrb[0].mxu0
  %v101 = vpop.f32.mrb[0].mxu0
  %v102 = vpop.f32.mrb[0].mxu0
  %103 = vdwg.mxu0
  %v104 = vpack.c.bf16 %v99, %v99
  %v105 = vld [vmem:[%s3] sm:$0x1]
  %v107 = vpack.i.b16 %v105, %v105
  %v109 = vlaneseq
  %v110 = vshrl.u32 %v109, 7
  %v111 = vsub.s32 0, %v110
  %v112 = vrot.slane %v107, %v111
  %v113 = vadd.bf16 %v104, %v112
  %s114 = sld [smem:[#allocation3]]
  %p116 = scmp.ne.f32.partialorder %s114, %s114
  %s117 = sshrl.u32 %s114, 16
  %s118 = sand.u32 %s117, 1
  %s119 = sadd.s32 32767, %s118
  %s120 = sadd.s32 %s114, %s119
  %s121 = sand.u32 %s120, 4294901760
  %s122 = scalar_select %p116, 2143289344, %s121
  %s124 = sshrl.u32 %s122, 16
  %vm125 = vcmp.gt.bf16.partialorder %v113, 0
  %s126 = sshll.u32 %s124, 16
  %s127 = sor.u32 %s124, %s126
  %v128 = vstv %s127
  %v130 = vmul.bf16 %v128, %v113
  %v131 = vsel %vm125, %v113, %v130
  %v132 = vld [vmem:[%s4] sm:$0xf]
  %v133 = vld [vmem:[%s4 + $0x4] sm:$0xf]
  %v134 = vld [vmem:[%s4 + $0x8] sm:$0xf]
  %v135 = vld [vmem:[%s4 + $0xc] sm:$0xf]
  %v140 = vunpack.c.l.b16 %v132
  %v141 = vunpack.c.l.b16 %v133
  %v142 = vunpack.c.l.b16 %v134
  %v143 = vunpack.c.l.b16 %v135
  %v144 = vpack.c.b16 %v141, %v140
  %v145 = vpack.c.b16 %v143, %v142
  %vm148 = vcmask 261120
  %v150 = vsel %vm148, %v131, 0
  %152 = vmatprep.subr.bf16.mxu0 0
  %153 = vmatpush1.bf16.msra.mxu0 %v144
  %154 = vmatprep.subr.bf16.mxu0 0
  %155 = vmatpush1.bf16.msra.mxu0 %v145
  %156 = vmatprep.subr.bf16.mxu0 0
  %157 = vmatpush1.bf16.msra.mxu0 0
  %158 = vmatprep.subr.bf16.mxu0 0
  %159 = vmatpush1.bf16.msra.mxu0 0
  %160 = vmatprep.subr.bf16.mxu0 0
  %161 = vmatpush1.bf16.msra.mxu0 0
  %162 = vmatprep.subr.bf16.mxu0 0
  %163 = vmatpush1.bf16.msra.mxu0 0
  %164 = vmatprep.subr.bf16.mxu0 0
  %165 = vmatpush1.bf16.msra.mxu0 0
  %166 = vmatprep.subr.bf16.mxu0 0
  %167 = vmatpush1.bf16.msra.mxu0 0
  %168 = vmatprep.subr.bf16.mxu0 0
  %169 = vmatpush1.bf16.msra.mxu0 0
  %170 = vmatprep.subr.bf16.mxu0 0
  %171 = vmatpush1.bf16.msra.mxu0 0
  %172 = vmatprep.subr.bf16.mxu0 0
  %173 = vmatpush1.bf16.msra.mxu0 0
  %174 = vmatprep.subr.bf16.mxu0 0
  %175 = vmatpush1.bf16.msra.mxu0 0
  %176 = vmatprep.subr.bf16.mxu0 0
  %177 = vmatpush1.bf16.msra.mxu0 0
  %178 = vmatprep.subr.bf16.mxu0 0
  %179 = vmatpush1.bf16.msra.mxu0 0
  %180 = vmatprep.subr.bf16.mxu0 0
  %181 = vmatpush1.bf16.msra.mxu0 0
  %182 = vmatprep.subr.bf16.mxu0 0
  %183 = vmatpush1.bf16.msra.mxu0 0
  %184 = vmatprep.mubr.bf16.mxu0 0
  %185 = vmatmul.mubr.bf16.gmra.mrb[0].mxu0 %v150
  %v186 = vpop.f32.mrb[0].mxu0
  %v187 = vadd.f32 0.0, %v186
  %v188 = vpop.f32.mrb[0].mxu0
  %v189 = vpop.f32.mrb[0].mxu0
  %v190 = vpop.f32.mrb[0].mxu0
  %191 = vdwg.mxu0
  %v192 = vpack.c.bf16 %v187, %v187
  %v193 = vld [vmem:[%s5] sm:$0x1]
  %v195 = vpack.i.b16 %v193, %v193
  %v197 = vlaneseq
  %v198 = vshrl.u32 %v197, 7
  %v199 = vsub.s32 0, %v198
  %v200 = vrot.slane %v195, %v199
  %v201 = vadd.bf16 %v192, %v200
  %s202 = sld [smem:[#allocation3 + $0x1]]
  %p204 = scmp.ne.f32.partialorder %s202, %s202
  %s205 = sshrl.u32 %s202, 16
  %s206 = sand.u32 %s205, 1
  %s207 = sadd.s32 32767, %s206
  %s208 = sadd.s32 %s202, %s207
  %s209 = sand.u32 %s208, 4294901760
  %s210 = scalar_select %p204, 2143289344, %s209
  %s212 = sshrl.u32 %s210, 16
  %vm213 = vcmp.gt.bf16.partialorder %v201, 0
  %s214 = sshll.u32 %s212, 16
  %s215 = sor.u32 %s212, %s214
  %v216 = vstv %s215
  %v218 = vmul.bf16 %v216, %v201
  %v219 = vsel %vm213, %v201, %v218
  %v220 = vld [vmem:[%s6] sm:$0xf]
  %v221 = vld [vmem:[%s6 + $0x4] sm:$0xf]
  %v222 = vld [vmem:[%s6 + $0x8] sm:$0xf]
  %v223 = vld [vmem:[%s6 + $0xc] sm:$0xf]
  %v224 = vld [vmem:[%s6 + $0x10] sm:$0xf]
  %v225 = vld [vmem:[%s6 + $0x14] sm:$0xf]
  %v226 = vld [vmem:[%s6 + $0x18] sm:$0xf]
  %v227 = vld [vmem:[%s6 + $0x1c] sm:$0xf]
  %v236 = vunpack.c.l.b16 %v220
  %v237 = vunpack.c.l.b16 %v221
  %v238 = vunpack.c.l.b16 %v222
  %v239 = vunpack.c.l.b16 %v223
  %v240 = vunpack.c.l.b16 %v224
  %v241 = vunpack.c.l.b16 %v225
  %v242 = vunpack.c.l.b16 %v226
  %v243 = vunpack.c.l.b16 %v227
  %v244 = vpack.c.b16 %v237, %v236
  %v245 = vpack.c.b16 %v239, %v238
  %v246 = vpack.c.b16 %v241, %v240
  %v247 = vpack.c.b16 %v243, %v242
  %vm252 = vcmask 523264
  %v254 = vsel %vm252, %v219, 0
  %256 = vmatprep.subr.bf16.mxu0 0
  %257 = vmatpush1.bf16.msra.mxu0 %v244
  %258 = vmatprep.subr.bf16.mxu0 0
  %259 = vmatpush1.bf16.msra.mxu0 %v245
  %260 = vmatprep.subr.bf16.mxu0 0
  %261 = vmatpush1.bf16.msra.mxu0 %v246
  %262 = vmatprep.subr.bf16.mxu0 0
  %263 = vmatpush1.bf16.msra.mxu0 %v247
  %264 = vmatprep.subr.bf16.mxu0 0
  %265 = vmatpush1.bf16.msra.mxu0 0
  %266 = vmatprep.subr.bf16.mxu0 0
  %267 = vmatpush1.bf16.msra.mxu0 0
  %268 = vmatprep.subr.bf16.mxu0 0
  %269 = vmatpush1.bf16.msra.mxu0 0
  %270 = vmatprep.subr.bf16.mxu0 0
  %271 = vmatpush1.bf16.msra.mxu0 0
  %272 = vmatprep.subr.bf16.mxu0 0
  %273 = vmatpush1.bf16.msra.mxu0 0
  %274 = vmatprep.subr.bf16.mxu0 0
  %275 = vmatpush1.bf16.msra.mxu0 0
  %276 = vmatprep.subr.bf16.mxu0 0
  %277 = vmatpush1.bf16.msra.mxu0 0
  %278 = vmatprep.subr.bf16.mxu0 0
  %279 = vmatpush1.bf16.msra.mxu0 0
  %280 = vmatprep.subr.bf16.mxu0 0
  %281 = vmatpush1.bf16.msra.mxu0 0
  %282 = vmatprep.subr.bf16.mxu0 0
  %283 = vmatpush1.bf16.msra.mxu0 0
  %284 = vmatprep.subr.bf16.mxu0 0
  %285 = vmatpush1.bf16.msra.mxu0 0
  %286 = vmatprep.subr.bf16.mxu0 0
  %287 = vmatpush1.bf16.msra.mxu0 0
  %288 = vmatprep.mubr.bf16.mxu0 0
  %289 = vmatmul.mubr.bf16.gmra.mrb[0].mxu0 %v254
  %v290 = vpop.f32.mrb[0].mxu0
  %v291 = vadd.f32 0.0, %v290
  %v292 = vpop.f32.mrb[0].mxu0
  %v293 = vpop.f32.mrb[0].mxu0
  %v294 = vpop.f32.mrb[0].mxu0
  %295 = vdwg.mxu0
  %v296 = vpack.c.bf16 %v291, %v291
  %v297 = vld [vmem:[%s7] sm:$0x1]
  %v299 = vpack.i.b16 %v297, %v297
  %v301 = vlaneseq
  %v302 = vshrl.u32 %v301, 7
  %v303 = vsub.s32 0, %v302
  %v304 = vrot.slane %v299, %v303
  %v305 = vadd.bf16 %v296, %v304
  %s306 = sld [smem:[#allocation3 + $0x2]]
  %p308 = scmp.ne.f32.partialorder %s306, %s306
  %s309 = sshrl.u32 %s306, 16
  %s310 = sand.u32 %s309, 1
  %s311 = sadd.s32 32767, %s310
  %s312 = sadd.s32 %s306, %s311
  %s313 = sand.u32 %s312, 4294901760
  %s314 = scalar_select %p308, 2143289344, %s313
  %s316 = sshrl.u32 %s314, 16
  %vm317 = vcmp.gt.bf16.partialorder %v305, 0
  %s318 = sshll.u32 %s316, 16
  %s319 = sor.u32 %s316, %s318
  %v320 = vstv %s319
  %v322 = vmul.bf16 %v320, %v305
  %v323 = vsel %vm317, %v305, %v322
  %v324 = vld [vmem:[%s8] sm:$0xff]
  %v325 = vld [vmem:[%s8 + $0x8] sm:$0xff]
  %v326 = vld [vmem:[%s8 + $0x10] sm:$0xff]
  %v327 = vld [vmem:[%s8 + $0x18] sm:$0xff]
  %v328 = vld [vmem:[%s8 + $0x20] sm:$0xff]
  %v329 = vld [vmem:[%s8 + $0x28] sm:$0xff]
  %v330 = vld [vmem:[%s8 + $0x30] sm:$0xff]
  %v331 = vld [vmem:[%s8 + $0x38] sm:$0xff]
  %v332 = vld [vmem:[%s8 + $0x40] sm:$0xff]
  %v333 = vld [vmem:[%s8 + $0x48] sm:$0xff]
  %v334 = vld [vmem:[%s8 + $0x50] sm:$0xff]
  %v335 = vld [vmem:[%s8 + $0x58] sm:$0xff]
  %v336 = vld [vmem:[%s8 + $0x60] sm:$0xff]
  %v337 = vld [vmem:[%s8 + $0x68] sm:$0xff]
  %v338 = vld [vmem:[%s8 + $0x70] sm:$0xff]
  %v339 = vld [vmem:[%s8 + $0x78] sm:$0xff]
  %v356 = vunpack.c.l.b16 %v324
  %v357 = vunpack.c.h.b16 %v324
  %v358 = vunpack.c.l.b16 %v325
  %v359 = vunpack.c.h.b16 %v325
  %v360 = vunpack.c.l.b16 %v326
  %v361 = vunpack.c.h.b16 %v326
  %v362 = vunpack.c.l.b16 %v327
  %v363 = vunpack.c.h.b16 %v327
  %v364 = vunpack.c.l.b16 %v328
  %v365 = vunpack.c.h.b16 %v328
  %v366 = vunpack.c.l.b16 %v329
  %v367 = vunpack.c.h.b16 %v329
  %v368 = vunpack.c.l.b16 %v330
  %v369 = vunpack.c.h.b16 %v330
  %v370 = vunpack.c.l.b16 %v331
  %v371 = vunpack.c.h.b16 %v331
  %v372 = vunpack.c.l.b16 %v332
  %v373 = vunpack.c.h.b16 %v332
  %v374 = vunpack.c.l.b16 %v333
  %v375 = vunpack.c.h.b16 %v333
  %v376 = vunpack.c.l.b16 %v334
  %v377 = vunpack.c.h.b16 %v334
  %v378 = vunpack.c.l.b16 %v335
  %v379 = vunpack.c.h.b16 %v335
  %v380 = vunpack.c.l.b16 %v336
  %v381 = vunpack.c.h.b16 %v336
  %v382 = vunpack.c.l.b16 %v337
  %v383 = vunpack.c.h.b16 %v337
  %v384 = vunpack.c.l.b16 %v338
  %v385 = vunpack.c.h.b16 %v338
  %v386 = vunpack.c.l.b16 %v339
  %v387 = vunpack.c.h.b16 %v339
  %v388 = vpack.c.b16 %v358, %v356
  %v389 = vpack.c.b16 %v359, %v357
  %v390 = vpack.c.b16 %v362, %v360
  %v391 = vpack.c.b16 %v363, %v361
  %v392 = vpack.c.b16 %v366, %v364
  %v393 = vpack.c.b16 %v367, %v365
  %v394 = vpack.c.b16 %v370, %v368
  %v395 = vpack.c.b16 %v371, %v369
  %v396 = vpack.c.b16 %v374, %v372
  %v397 = vpack.c.b16 %v375, %v373
  %v398 = vpack.c.b16 %v378, %v376
  %v399 = vpack.c.b16 %v379, %v377
  %v400 = vpack.c.b16 %v382, %v380
  %v401 = vpack.c.b16 %v383, %v381
  %v402 = vpack.c.b16 %v386, %v384
  %v403 = vpack.c.b16 %v387, %v385
  %420 = vmatprep.subr.bf16.mxu0 %v389
  %421 = vmatpush1.bf16.msra.mxu0 %v388
  %422 = vmatprep.subr.bf16.mxu0 %v391
  %423 = vmatpush1.bf16.msra.mxu0 %v390
  %424 = vmatprep.subr.bf16.mxu0 %v393
  %425 = vmatpush1.bf16.msra.mxu0 %v392
  %426 = vmatprep.subr.bf16.mxu0 %v395
  %427 = vmatpush1.bf16.msra.mxu0 %v394
  %428 = vmatprep.subr.bf16.mxu0 %v397
  %429 = vmatpush1.bf16.msra.mxu0 %v396
  %430 = vmatprep.subr.bf16.mxu0 %v399
  %431 = vmatpush1.bf16.msra.mxu0 %v398
  %432 = vmatprep.subr.bf16.mxu0 %v401
  %433 = vmatpush1.bf16.msra.mxu0 %v400
  %434 = vmatprep.subr.bf16.mxu0 %v403
  %435 = vmatpush1.bf16.msra.mxu0 %v402
  %436 = vmatprep.subr.bf16.mxu0 0
  %437 = vmatpush1.bf16.msra.mxu0 0
  %438 = vmatprep.subr.bf16.mxu0 0
  %439 = vmatpush1.bf16.msra.mxu0 0
  %440 = vmatprep.subr.bf16.mxu0 0
  %441 = vmatpush1.bf16.msra.mxu0 0
  %442 = vmatprep.subr.bf16.mxu0 0
  %443 = vmatpush1.bf16.msra.mxu0 0
  %444 = vmatprep.subr.bf16.mxu0 0
  %445 = vmatpush1.bf16.msra.mxu0 0
  %446 = vmatprep.subr.bf16.mxu0 0
  %447 = vmatpush1.bf16.msra.mxu0 0
  %448 = vmatprep.subr.bf16.mxu0 0
  %449 = vmatpush1.bf16.msra.mxu0 0
  %450 = vmatprep.subr.bf16.mxu0 0
  %451 = vmatpush1.bf16.msra.mxu0 0
  %452 = vmatprep.mubr.bf16.mxu0 0
  %453 = vmatmul.mubr.bf16.gmra.mrb[0].mxu0 %v323
  %v454 = vpop.f32.mrb[0].mxu0
  %v455 = vadd.f32 0.0, %v454
  %v456 = vpop.f32.mrb[0].mxu0
  %v457 = vadd.f32 0.0, %v456
  %v458 = vpop.f32.mrb[0].mxu0
  %v459 = vpop.f32.mrb[0].mxu0
  %460 = vdwg.mxu0
  %v461 = vpack.c.bf16 %v455, %v455
  %v462 = vpack.c.bf16 %v457, %v457
  %v463 = vld [vmem:[%s9] sm:$0x3]
  %v466 = vunpack.c.l.s4 1966171168
  %v467 = vunpack.c.0.s8 %v466
  %v468 = vlaneseq
  %v469 = vshrl.u32 %v468, 7
  %v470 = vsub.s32 %v467, %v469
  %v471 = vrot.slane %v463, %v470
  %v472 = vcombine.high %v471, %v471
  %v474 = vunpack.c.l.s4 1966171168
  %v475 = vunpack.c.0.s8 %v474
  %v476 = vlaneseq
  %v477 = vshrl.u32 %v476, 7
  %v478 = vsub.s32 %v475, %v477
  %v479 = vrot.slane %v471, %v478
  %v481 = vunpack.c.l.s4 1966171168
  %v482 = vunpack.c.0.s8 %v481
  %v483 = vlaneseq
  %v484 = vshrl.u32 %v483, 7
  %v485 = vsub.s32 %v482, %v484
  %v486 = vrot.slane %v472, %v485
  %v488 = vpack.i.b16 %v479, %v479
  %v490 = vlaneseq
  %v491 = vshrl.u32 %v490, 7
  %v492 = vsub.s32 0, %v491
  %v493 = vrot.slane %v488, %v492
  %v495 = vpack.i.b16 %v486, %v486
  %v497 = vlaneseq
  %v498 = vshrl.u32 %v497, 7
  %v499 = vsub.s32 0, %v498
  %v500 = vrot.slane %v495, %v499
  %v501 = vadd.bf16 %v461, %v493
  %v502 = vadd.bf16 %v462, %v500
  %s503 = sld [smem:[#allocation3 + $0x3]]
  %p505 = scmp.ne.f32.partialorder %s503, %s503
  %s506 = sshrl.u32 %s503, 16
  %s507 = sand.u32 %s506, 1
  %s508 = sadd.s32 32767, %s507
  %s509 = sadd.s32 %s503, %s508
  %s510 = sand.u32 %s509, 4294901760
  %s511 = scalar_select %p505, 2143289344, %s510
  %s513 = sshrl.u32 %s511, 16
  %vm514 = vcmp.gt.bf16.partialorder %v501, 0
  %vm515 = vcmp.gt.bf16.partialorder %v502, 0
  %s516 = sshll.u32 %s513, 16
  %s517 = sor.u32 %s513, %s516
  %v518 = vstv %s517
  %v520 = vmul.bf16 %v518, %v501
  %v521 = vmul.bf16 %v518, %v502
  %v522 = vsel %vm514, %v501, %v520
  %v523 = vsel %vm515, %v502, %v521
  %v524 = vld [vmem:[%s10] sm:$0xff]
  %v525 = vld [vmem:[%s10 + $0x8] sm:$0xff]
  %v526 = vld [vmem:[%s10 + $0x10] sm:$0xff]
  %v527 = vld [vmem:[%s10 + $0x18] sm:$0xff]
  %v528 = vld [vmem:[%s10 + $0x20] sm:$0xff]
  %v529 = vld [vmem:[%s10 + $0x28] sm:$0xff]
  %v530 = vld [vmem:[%s10 + $0x30] sm:$0xff]
  %v531 = vld [vmem:[%s10 + $0x38] sm:$0xff]
  %v532 = vld [vmem:[%s10 + $0x40] sm:$0xff]
  %v533 = vld [vmem:[%s10 + $0x48] sm:$0xff]
  %v534 = vld [vmem:[%s10 + $0x50] sm:$0xff]
  %v535 = vld [vmem:[%s10 + $0x58] sm:$0xff]
  %v536 = vld [vmem:[%s10 + $0x60] sm:$0xff]
  %v537 = vld [vmem:[%s10 + $0x68] sm:$0xff]
  %v538 = vld [vmem:[%s10 + $0x70] sm:$0xff]
  %v539 = vld [vmem:[%s10 + $0x78] sm:$0xff]
  %v540 = vld [vmem:[%s10 + $0x80] sm:$0xff]
  %v541 = vld [vmem:[%s10 + $0x88] sm:$0xff]
  %v542 = vld [vmem:[%s10 + $0x90] sm:$0xff]
  %v543 = vld [vmem:[%s10 + $0x98] sm:$0xff]
  %v544 = vld [vmem:[%s10 + $0xa0] sm:$0xff]
  %v545 = vld [vmem:[%s10 + $0xa8] sm:$0xff]
  %v546 = vld [vmem:[%s10 + $0xb0] sm:$0xff]
  %v547 = vld [vmem:[%s10 + $0xb8] sm:$0xff]
  %v548 = vld [vmem:[%s10 + $0xc0] sm:$0xff]
  %v549 = vld [vmem:[%s10 + $0xc8] sm:$0xff]
  %v550 = vld [vmem:[%s10 + $0xd0] sm:$0xff]
  %v551 = vld [vmem:[%s10 + $0xd8] sm:$0xff]
  %v552 = vld [vmem:[%s10 + $0xe0] sm:$0xff]
  %v553 = vld [vmem:[%s10 + $0xe8] sm:$0xff]
  %v554 = vld [vmem:[%s10 + $0xf0] sm:$0xff]
  %v555 = vld [vmem:[%s10 + $0xf8] sm:$0xff]
  %v556 = vld [vmem:[%s10 + $0x100] sm:$0xff]
  %v557 = vld [vmem:[%s10 + $0x108] sm:$0xff]
  %v558 = vld [vmem:[%s10 + $0x110] sm:$0xff]
  %v559 = vld [vmem:[%s10 + $0x118] sm:$0xff]
  %v560 = vld [vmem:[%s10 + $0x120] sm:$0xff]
  %v561 = vld [vmem:[%s10 + $0x128] sm:$0xff]
  %v562 = vld [vmem:[%s10 + $0x130] sm:$0xff]
  %v563 = vld [vmem:[%s10 + $0x138] sm:$0xff]
  %v564 = vld [vmem:[%s10 + $0x140] sm:$0xff]
  %v565 = vld [vmem:[%s10 + $0x148] sm:$0xff]
  %v566 = vld [vmem:[%s10 + $0x150] sm:$0xff]
  %v567 = vld [vmem:[%s10 + $0x158] sm:$0xff]
  %v568 = vld [vmem:[%s10 + $0x160] sm:$0xff]
  %v569 = vld [vmem:[%s10 + $0x168] sm:$0xff]
  %v570 = vld [vmem:[%s10 + $0x170] sm:$0xff]
  %v571 = vld [vmem:[%s10 + $0x178] sm:$0xff]
  %v572 = vld [vmem:[%s10 + $0x180] sm:$0xff]
  %v573 = vld [vmem:[%s10 + $0x188] sm:$0xff]
  %v574 = vld [vmem:[%s10 + $0x190] sm:$0xff]
  %v575 = vld [vmem:[%s10 + $0x198] sm:$0xff]
  %v576 = vld [vmem:[%s10 + $0x1a0] sm:$0xff]
  %v577 = vld [vmem:[%s10 + $0x1a8] sm:$0xff]
  %v578 = vld [vmem:[%s10 + $0x1b0] sm:$0xff]
  %v579 = vld [vmem:[%s10 + $0x1b8] sm:$0xff]
  %v580 = vld [vmem:[%s10 + $0x1c0] sm:$0xff]
  %v581 = vld [vmem:[%s10 + $0x1c8] sm:$0xff]
  %v582 = vld [vmem:[%s10 + $0x1d0] sm:$0xff]
  %v583 = vld [vmem:[%s10 + $0x1d8] sm:$0xff]
  %v584 = vld [vmem:[%s10 + $0x1e0] sm:$0xff]
  %v585 = vld [vmem:[%s10 + $0x1e8] sm:$0xff]
  %v586 = vld [vmem:[%s10 + $0x1f0] sm:$0xff]
  %v587 = vld [vmem:[%s10 + $0x1f8] sm:$0xff]
  %v652 = vunpack.c.l.b16 %v524
  %v653 = vunpack.c.h.b16 %v524
  %v654 = vunpack.c.l.b16 %v525
  %v655 = vunpack.c.h.b16 %v525
  %v656 = vunpack.c.l.b16 %v526
  %v657 = vunpack.c.h.b16 %v526
  %v658 = vunpack.c.l.b16 %v527
  %v659 = vunpack.c.h.b16 %v527
  %v660 = vunpack.c.l.b16 %v528
  %v661 = vunpack.c.h.b16 %v528
  %v662 = vunpack.c.l.b16 %v529
  %v663 = vunpack.c.h.b16 %v529
  %v664 = vunpack.c.l.b16 %v530
  %v665 = vunpack.c.h.b16 %v530
  %v666 = vunpack.c.l.b16 %v531
  %v667 = vunpack.c.h.b16 %v531
  %v668 = vunpack.c.l.b16 %v532
  %v669 = vunpack.c.h.b16 %v532
  %v670 = vunpack.c.l.b16 %v533
  %v671 = vunpack.c.h.b16 %v533
  %v672 = vunpack.c.l.b16 %v534
  %v673 = vunpack.c.h.b16 %v534
  %v674 = vunpack.c.l.b16 %v535
  %v675 = vunpack.c.h.b16 %v535
  %v676 = vunpack.c.l.b16 %v536
  %v677 = vunpack.c.h.b16 %v536
  %v678 = vunpack.c.l.b16 %v537
  %v679 = vunpack.c.h.b16 %v537
  %v680 = vunpack.c.l.b16 %v538
  %v681 = vunpack.c.h.b16 %v538
  %v682 = vunpack.c.l.b16 %v539
  %v683 = vunpack.c.h.b16 %v539
  %v684 = vunpack.c.l.b16 %v540
  %v685 = vunpack.c.h.b16 %v540
  %v686 = vunpack.c.l.b16 %v541
  %v687 = vunpack.c.h.b16 %v541
  %v688 = vunpack.c.l.b16 %v542
  %v689 = vunpack.c.h.b16 %v542
  %v690 = vunpack.c.l.b16 %v543
  %v691 = vunpack.c.h.b16 %v543
  %v692 = vunpack.c.l.b16 %v544
  %v693 = vunpack.c.h.b16 %v544
  %v694 = vunpack.c.l.b16 %v545
  %v695 = vunpack.c.h.b16 %v545
  %v696 = vunpack.c.l.b16 %v546
  %v697 = vunpack.c.h.b16 %v546
  %v698 = vunpack.c.l.b16 %v547
  %v699 = vunpack.c.h.b16 %v547
  %v700 = vunpack.c.l.b16 %v548
  %v701 = vunpack.c.h.b16 %v548
  %v702 = vunpack.c.l.b16 %v549
  %v703 = vunpack.c.h.b16 %v549
  %v704 = vunpack.c.l.b16 %v550
  %v705 = vunpack.c.h.b16 %v550
  %v706 = vunpack.c.l.b16 %v551
  %v707 = vunpack.c.h.b16 %v551
  %v708 = vunpack.c.l.b16 %v552
  %v709 = vunpack.c.h.b16 %v552
  %v710 = vunpack.c.l.b16 %v553
  %v711 = vunpack.c.h.b16 %v553
  %v712 = vunpack.c.l.b16 %v554
  %v713 = vunpack.c.h.b16 %v554
  %v714 = vunpack.c.l.b16 %v555
  %v715 = vunpack.c.h.b16 %v555
  %v716 = vunpack.c.l.b16 %v556
  %v717 = vunpack.c.h.b16 %v556
  %v718 = vunpack.c.l.b16 %v557
  %v719 = vunpack.c.h.b16 %v557
  %v720 = vunpack.c.l.b16 %v558
  %v721 = vunpack.c.h.b16 %v558
  %v722 = vunpack.c.l.b16 %v559
  %v723 = vunpack.c.h.b16 %v559
  %v724 = vunpack.c.l.b16 %v560
  %v725 = vunpack.c.h.b16 %v560
  %v726 = vunpack.c.l.b16 %v561
  %v727 = vunpack.c.h.b16 %v561
  %v728 = vunpack.c.l.b16 %v562
  %v729 = vunpack.c.h.b16 %v562
  %v730 = vunpack.c.l.b16 %v563
  %v731 = vunpack.c.h.b16 %v563
  %v732 = vunpack.c.l.b16 %v564
  %v733 = vunpack.c.h.b16 %v564
  %v734 = vunpack.c.l.b16 %v565
  %v735 = vunpack.c.h.b16 %v565
  %v736 = vunpack.c.l.b16 %v566
  %v737 = vunpack.c.h.b16 %v566
  %v738 = vunpack.c.l.b16 %v567
  %v739 = vunpack.c.h.b16 %v567
  %v740 = vunpack.c.l.b16 %v568
  %v741 = vunpack.c.h.b16 %v568
  %v742 = vunpack.c.l.b16 %v569
  %v743 = vunpack.c.h.b16 %v569
  %v744 = vunpack.c.l.b16 %v570
  %v745 = vunpack.c.h.b16 %v570
  %v746 = vunpack.c.l.b16 %v571
  %v747 = vunpack.c.h.b16 %v571
  %v748 = vunpack.c.l.b16 %v572
  %v749 = vunpack.c.h.b16 %v572
  %v750 = vunpack.c.l.b16 %v573
  %v751 = vunpack.c.h.b16 %v573
  %v752 = vunpack.c.l.b16 %v574
  %v753 = vunpack.c.h.b16 %v574
  %v754 = vunpack.c.l.b16 %v575
  %v755 = vunpack.c.h.b16 %v575
  %v756 = vunpack.c.l.b16 %v576
  %v757 = vunpack.c.h.b16 %v576
  %v758 = vunpack.c.l.b16 %v577
  %v759 = vunpack.c.h.b16 %v577
  %v760 = vunpack.c.l.b16 %v578
  %v761 = vunpack.c.h.b16 %v578
  %v762 = vunpack.c.l.b16 %v579
  %v763 = vunpack.c.h.b16 %v579
  %v764 = vunpack.c.l.b16 %v580
  %v765 = vunpack.c.h.b16 %v580
  %v766 = vunpack.c.l.b16 %v581
  %v767 = vunpack.c.h.b16 %v581
  %v768 = vunpack.c.l.b16 %v582
  %v769 = vunpack.c.h.b16 %v582
  %v770 = vunpack.c.l.b16 %v583
  %v771 = vunpack.c.h.b16 %v583
  %v772 = vunpack.c.l.b16 %v584
  %v773 = vunpack.c.h.b16 %v584
  %v774 = vunpack.c.l.b16 %v585
  %v775 = vunpack.c.h.b16 %v585
  %v776 = vunpack.c.l.b16 %v586
  %v777 = vunpack.c.h.b16 %v586
  %v778 = vunpack.c.l.b16 %v587
  %v779 = vunpack.c.h.b16 %v587
  %v780 = vpack.c.b16 %v656, %v652
  %v781 = vpack.c.b16 %v657, %v653
  %v782 = vpack.c.b16 %v658, %v654
  %v783 = vpack.c.b16 %v659, %v655
  %v784 = vpack.c.b16 %v664, %v660
  %v785 = vpack.c.b16 %v665, %v661
  %v786 = vpack.c.b16 %v666, %v662
  %v787 = vpack.c.b16 %v667, %v663
  %v788 = vpack.c.b16 %v672, %v668
  %v789 = vpack.c.b16 %v673, %v669
  %v790 = vpack.c.b16 %v674, %v670
  %v791 = vpack.c.b16 %v675, %v671
  %v792 = vpack.c.b16 %v680, %v676
  %v793 = vpack.c.b16 %v681, %v677
  %v794 = vpack.c.b16 %v682, %v678
  %v795 = vpack.c.b16 %v683, %v679
  %v796 = vpack.c.b16 %v688, %v684
  %v797 = vpack.c.b16 %v689, %v685
  %v798 = vpack.c.b16 %v690, %v686
  %v799 = vpack.c.b16 %v691, %v687
  %v800 = vpack.c.b16 %v696, %v692
  %v801 = vpack.c.b16 %v697, %v693
  %v802 = vpack.c.b16 %v698, %v694
  %v803 = vpack.c.b16 %v699, %v695
  %v804 = vpack.c.b16 %v704, %v700
  %v805 = vpack.c.b16 %v705, %v701
  %v806 = vpack.c.b16 %v706, %v702
  %v807 = vpack.c.b16 %v707, %v703
  %v808 = vpack.c.b16 %v712, %v708
  %v809 = vpack.c.b16 %v713, %v709
  %v810 = vpack.c.b16 %v714, %v710
  %v811 = vpack.c.b16 %v715, %v711
  %v812 = vpack.c.b16 %v720, %v716
  %v813 = vpack.c.b16 %v721, %v717
  %v814 = vpack.c.b16 %v722, %v718
  %v815 = vpack.c.b16 %v723, %v719
  %v816 = vpack.c.b16 %v728, %v724
  %v817 = vpack.c.b16 %v729, %v725
  %v818 = vpack.c.b16 %v730, %v726
  %v819 = vpack.c.b16 %v731, %v727
  %v820 = vpack.c.b16 %v736, %v732
  %v821 = vpack.c.b16 %v737, %v733
  %v822 = vpack.c.b16 %v738, %v734
  %v823 = vpack.c.b16 %v739, %v735
  %v824 = vpack.c.b16 %v744, %v740
  %v825 = vpack.c.b16 %v745, %v741
  %v826 = vpack.c.b16 %v746, %v742
  %v827 = vpack.c.b16 %v747, %v743
  %v828 = vpack.c.b16 %v752, %v748
  %v829 = vpack.c.b16 %v753, %v749
  %v830 = vpack.c.b16 %v754, %v750
  %v831 = vpack.c.b16 %v755, %v751
  %v832 = vpack.c.b16 %v760, %v756
  %v833 = vpack.c.b16 %v761, %v757
  %v834 = vpack.c.b16 %v762, %v758
  %v835 = vpack.c.b16 %v763, %v759
  %v836 = vpack.c.b16 %v768, %v764
  %v837 = vpack.c.b16 %v769, %v765
  %v838 = vpack.c.b16 %v770, %v766
  %v839 = vpack.c.b16 %v771, %v767
  %v840 = vpack.c.b16 %v776, %v772
  %v841 = vpack.c.b16 %v777, %v773
  %v842 = vpack.c.b16 %v778, %v774
  %v843 = vpack.c.b16 %v779, %v775
  %908 = vmatprep.subr.bf16.mxu0 %v781
  %909 = vmatpush1.bf16.msra.mxu0 %v780
  %910 = vmatprep.subr.bf16.mxu0 %v785
  %911 = vmatpush1.bf16.msra.mxu0 %v784
  %912 = vmatprep.subr.bf16.mxu0 %v789
  %913 = vmatpush1.bf16.msra.mxu0 %v788
  %914 = vmatprep.subr.bf16.mxu0 %v793
  %915 = vmatpush1.bf16.msra.mxu0 %v792
  %916 = vmatprep.subr.bf16.mxu0 %v797
  %917 = vmatpush1.bf16.msra.mxu0 %v796
  %918 = vmatprep.subr.bf16.mxu0 %v801
  %919 = vmatpush1.bf16.msra.mxu0 %v800
  %920 = vmatprep.subr.bf16.mxu0 %v805
  %921 = vmatpush1.bf16.msra.mxu0 %v804
  %922 = vmatprep.subr.bf16.mxu0 %v809
  %923 = vmatpush1.bf16.msra.mxu0 %v808
  %924 = vmatprep.subr.bf16.mxu0 %v813
  %925 = vmatpush1.bf16.msra.mxu0 %v812
  %926 = vmatprep.subr.bf16.mxu0 %v817
  %927 = vmatpush1.bf16.msra.mxu0 %v816
  %928 = vmatprep.subr.bf16.mxu0 %v821
  %929 = vmatpush1.bf16.msra.mxu0 %v820
  %930 = vmatprep.subr.bf16.mxu0 %v825
  %931 = vmatpush1.bf16.msra.mxu0 %v824
  %932 = vmatprep.subr.bf16.mxu0 %v829
  %933 = vmatpush1.bf16.msra.mxu0 %v828
  %934 = vmatprep.subr.bf16.mxu0 %v833
  %935 = vmatpush1.bf16.msra.mxu0 %v832
  %936 = vmatprep.subr.bf16.mxu0 %v837
  %937 = vmatpush1.bf16.msra.mxu0 %v836
  %938 = vmatprep.subr.bf16.mxu0 %v841
  %939 = vmatpush1.bf16.msra.mxu0 %v840
  %940 = vmatprep.mubr.bf16.mxu0 %v523
  %941 = vmatmul.mubr.bf16.gmra.mrb[0].mxu0 %v522
  %v942 = vpop.f32.mrb[0].mxu0
  %v943 = vadd.f32 0.0, %v942
  %v944 = vpop.f32.mrb[0].mxu0
  %v945 = vadd.f32 0.0, %v944
  %v946 = vpop.f32.mrb[0].mxu0
  %v947 = vpop.f32.mrb[0].mxu0
  %948 = vdwg.mxu0
  %949 = vmatprep.subr.bf16.mxu0 %v783
  %950 = vmatpush1.bf16.msra.mxu0 %v782
  %951 = vmatprep.subr.bf16.mxu0 %v787
  %952 = vmatpush1.bf16.msra.mxu0 %v786
  %953 = vmatprep.subr.bf16.mxu0 %v791
  %954 = vmatpush1.bf16.msra.mxu0 %v790
  %955 = vmatprep.subr.bf16.mxu0 %v795
  %956 = vmatpush1.bf16.msra.mxu0 %v794
  %957 = vmatprep.subr.bf16.mxu0 %v799
  %958 = vmatpush1.bf16.msra.mxu0 %v798
  %959 = vmatprep.subr.bf16.mxu0 %v803
  %960 = vmatpush1.bf16.msra.mxu0 %v802
  %961 = vmatprep.subr.bf16.mxu0 %v807
  %962 = vmatpush1.bf16.msra.mxu0 %v806
  %963 = vmatprep.subr.bf16.mxu0 %v811
  %964 = vmatpush1.bf16.msra.mxu0 %v810
  %965 = vmatprep.subr.bf16.mxu0 %v815
  %966 = vmatpush1.bf16.msra.mxu0 %v814
  %967 = vmatprep.subr.bf16.mxu0 %v819
  %968 = vmatpush1.bf16.msra.mxu0 %v818
  %969 = vmatprep.subr.bf16.mxu0 %v823
  %970 = vmatpush1.bf16.msra.mxu0 %v822
  %971 = vmatprep.subr.bf16.mxu0 %v827
  %972 = vmatpush1.bf16.msra.mxu0 %v826
  %973 = vmatprep.subr.bf16.mxu0 %v831
  %974 = vmatpush1.bf16.msra.mxu0 %v830
  %975 = vmatprep.subr.bf16.mxu0 %v835
  %976 = vmatpush1.bf16.msra.mxu0 %v834
  %977 = vmatprep.subr.bf16.mxu0 %v839
  %978 = vmatpush1.bf16.msra.mxu0 %v838
  %979 = vmatprep.subr.bf16.mxu0 %v843
  %980 = vmatpush1.bf16.msra.mxu0 %v842
  %981 = vmatprep.mubr.bf16.mxu0 %v523
  %982 = vmatmul.mubr.bf16.gmra.mrb[0].mxu0 %v522
  %v983 = vpop.f32.mrb[0].mxu0
  %v984 = vadd.f32 0.0, %v983
  %v985 = vpop.f32.mrb[0].mxu0
  %v986 = vadd.f32 0.0, %v985
  %v987 = vpop.f32.mrb[0].mxu0
  %v988 = vpop.f32.mrb[0].mxu0
  %989 = vdwg.mxu0
  %v990 = vpack.c.bf16 %v943, %v943
  %v991 = vpack.c.bf16 %v945, %v945
  %v992 = vpack.c.bf16 %v984, %v984
  %v993 = vpack.c.bf16 %v986, %v986
  %v994 = vld [vmem:[%s11] sm:$0xf]
  %v997 = vunpack.c.l.s4 1966171168
  %v998 = vunpack.c.0.s8 %v997
  %v999 = vlaneseq
  %v1000 = vshrl.u32 %v999, 7
  %v1001 = vsub.s32 %v998, %v1000
  %v1002 = vrot.slane %v994, %v1001
  %v1003 = vcombine.high %v1002, %v1002
  %v1005 = vunpack.c.l.s4 1966171168
  %v1006 = vunpack.c.0.s8 %v1005
  %v1007 = vlaneseq
  %v1008 = vshrl.u32 %v1007, 7
  %v1009 = vsub.s32 %v1006, %v1008
  %v1010 = vrot.slane %v1002, %v1009
  %v1012 = vunpack.c.l.s4 1966171168
  %v1013 = vunpack.c.0.s8 %v1012
  %v1014 = vlaneseq
  %v1015 = vshrl.u32 %v1014, 7
  %v1016 = vsub.s32 %v1013, %v1015
  %v1017 = vrot.slane %v1003, %v1016
  %v1018 = vcombine.high %v1010, %v1010
  %v1019 = vcombine.high %v1017, %v1017
  %v1021 = vpack.i.b16 %v1010, %v1010
  %v1023 = vlaneseq
  %v1024 = vshrl.u32 %v1023, 7
  %v1025 = vsub.s32 0, %v1024
  %v1026 = vrot.slane %v1021, %v1025
  %v1028 = vpack.i.b16 %v1017, %v1017
  %v1030 = vlaneseq
  %v1031 = vshrl.u32 %v1030, 7
  %v1032 = vsub.s32 0, %v1031
  %v1033 = vrot.slane %v1028, %v1032
  %v1035 = vpack.i.b16 %v1018, %v1018
  %v1037 = vlaneseq
  %v1038 = vshrl.u32 %v1037, 7
  %v1039 = vsub.s32 0, %v1038
  %v1040 = vrot.slane %v1035, %v1039
  %v1042 = vpack.i.b16 %v1019, %v1019
  %v1044 = vlaneseq
  %v1045 = vshrl.u32 %v1044, 7
  %v1046 = vsub.s32 0, %v1045
  %v1047 = vrot.slane %v1042, %v1046
  %v1048 = vadd.bf16 %v990, %v1026
  %v1049 = vadd.bf16 %v991, %v1033
  %v1050 = vadd.bf16 %v992, %v1040
  %v1051 = vadd.bf16 %v993, %v1047
  %s1052 = sld [smem:[#allocation3 + $0x4]]
  %p1054 = scmp.ne.f32.partialorder %s1052, %s1052
  %s1055 = sshrl.u32 %s1052, 16
  %s1056 = sand.u32 %s1055, 1
  %s1057 = sadd.s32 32767, %s1056
  %s1058 = sadd.s32 %s1052, %s1057
  %s1059 = sand.u32 %s1058, 4294901760
  %s1060 = scalar_select %p1054, 2143289344, %s1059
  %s1062 = sshrl.u32 %s1060, 16
  %vm1063 = vcmp.gt.bf16.partialorder %v1048, 0
  %vm1064 = vcmp.gt.bf16.partialorder %v1049, 0
  %vm1065 = vcmp.gt.bf16.partialorder %v1050, 0
  %vm1066 = vcmp.gt.bf16.partialorder %v1051, 0
  %s1067 = sshll.u32 %s1062, 16
  %s1068 = sor.u32 %s1062, %s1067
  %v1069 = vstv %s1068
  %v1071 = vmul.bf16 %v1069, %v1048
  %v1072 = vmul.bf16 %v1069, %v1049
  %v1073 = vmul.bf16 %v1069, %v1050
  %v1074 = vmul.bf16 %v1069, %v1051
  %v1075 = vsel %vm1063, %v1048, %v1071
  %v1076 = vsel %vm1064, %v1049, %v1072
  %v1077 = vsel %vm1065, %v1050, %v1073
  %v1078 = vsel %vm1066, %v1051, %v1074
  %v1079 = vld [vmem:[%s12] sm:$0xf]
  %v1082 = vunpack.c.l.s4 1966171168
  %v1083 = vunpack.c.0.s8 %v1082
  %v1084 = vlaneseq
  %v1085 = vshrl.u32 %v1084, 7
  %v1086 = vsub.s32 %v1083, %v1085
  %v1087 = vrot.slane %v1079, %v1086
  %v1088 = vcombine.high %v1087, %v1087
  %v1090 = vunpack.c.l.s4 1966171168
  %v1091 = vunpack.c.0.s8 %v1090
  %v1092 = vlaneseq
  %v1093 = vshrl.u32 %v1092, 7
  %v1094 = vsub.s32 %v1091, %v1093
  %v1095 = vrot.slane %v1087, %v1094
  %v1097 = vunpack.c.l.s4 1966171168
  %v1098 = vunpack.c.0.s8 %v1097
  %v1099 = vlaneseq
  %v1100 = vshrl.u32 %v1099, 7
  %v1101 = vsub.s32 %v1098, %v1100
  %v1102 = vrot.slane %v1088, %v1101
  %v1103 = vcombine.high %v1095, %v1095
  %v1104 = vcombine.high %v1102, %v1102
  %v1106 = vpack.i.b16 %v1095, %v1095
  %v1108 = vlaneseq
  %v1109 = vshrl.u32 %v1108, 7
  %v1110 = vsub.s32 0, %v1109
  %v1111 = vrot.slane %v1106, %v1110
  %v1113 = vpack.i.b16 %v1102, %v1102
  %v1115 = vlaneseq
  %v1116 = vshrl.u32 %v1115, 7
  %v1117 = vsub.s32 0, %v1116
  %v1118 = vrot.slane %v1113, %v1117
  %v1120 = vpack.i.b16 %v1103, %v1103
  %v1122 = vlaneseq
  %v1123 = vshrl.u32 %v1122, 7
  %v1124 = vsub.s32 0, %v1123
  %v1125 = vrot.slane %v1120, %v1124
  %v1127 = vpack.i.b16 %v1104, %v1104
  %v1129 = vlaneseq
  %v1130 = vshrl.u32 %v1129, 7
  %v1131 = vsub.s32 0, %v1130
  %v1132 = vrot.slane %v1127, %v1131
  %v1133 = vmul.bf16 %v1075, %v1111
  %v1134 = vmul.bf16 %v1076, %v1118
  %v1135 = vmul.bf16 %v1077, %v1125
  %v1136 = vmul.bf16 %v1078, %v1132
  %v1137 = vunpack.c.l.bf16 %v1133
  %v1138 = vunpack.c.l.bf16 %v1134
  %v1139 = vunpack.c.l.bf16 %v1135
  %v1140 = vunpack.c.l.bf16 %v1136
  %v1141 = vadd.f32 %v1137, %v1138
  %v1142 = vadd.f32 %v1141, %v1139
  %v1143 = vadd.f32 %v1142, %v1140
  %1144 = vadd.xlane.f32.xlu0 %v1143
  %v1145 = vpop.xlane.xlu0 %1144
  %v1146 = vld [vmem:[#allocation4] sm:$0x1]
  %v1148 = vlaneseq
  %v1149 = vshrl.u32 %v1148, 7
  %v1150 = vsub.s32 0, %v1149
  %v1151 = vrot.slane %v1146, %v1150
  %v1153 = vadd.f32 %v1145, %v1151
  %vm1154 = vcmp.gt.f32.partialorder %v1153, 20.0
  %v1155 = vmin.f32 %v1153, 20.0
  %v1156 = vmul.f32 %v1155, 1.442695
  %v1157 = vpow.pop %v1156
  %v1158 = vadd.f32 %v1157, 1.0
  %v1159 = vlog2.pop %v1158
  %v1160 = vmul.f32 %v1159, 0.6931472
  %v1161 = vmul.f32 -0.5, %v1157
  %v1162 = vadd.f32 %v1161, 1.0
  %v1163 = vmul.f32 %v1162, %v1157
  %v1164 = vand.u32 2147483647, %v1157
  %vm1165 = vcmp.lt.f32.partialorder %v1164, 0.0004427343
  %v1166 = vsel %vm1165, %v1163, %v1160
  %v1167 = vsel %vm1154, %v1153, %v1166
  %vm1168 = vcmask 7168
  %1169 = vst.msk [vmem:[%s14] sm:$0xff] %vm1168, %v1167
  // Predicated region
  $region54: #{mse_derv_forward.1} parent=0 // pred_check
    _
  $region55: #{mse_derv_forward.1} parent=0 // pred_check_branch
    %1171 = sbr.rel (0) target = $region57
  $region56: #{mse_derv_forward.1} parent=0 // pred_region
    _
  $region57: #{mse_derv_forward.1} parent=0 // pred_fallthru
    _
  // Predicated region
  $region58: #{mse_derv_forward.1} parent=0 // pred_check
    _
  $region59: #{mse_derv_forward.1} parent=0 // pred_check_branch
    %1173 = sbr.rel (0) target = $region61
  $region60: #{mse_derv_forward.1} parent=0 // pred_region
    _
  $region61: #{mse_derv_forward.1} parent=0 // pred_fallthru
    _

</llo_original>
